<compile_context>
chip_gen: v6e
topology: v6e:2x2x1
jax: 0.10.0
libtpu: 0.0.40
codegen_flags: <defaults>
</compile_context>

<pallas_src>
import jax
import jax.numpy as jnp
from jax.experimental import pallas as pl
from jax.experimental.pallas import tpu as pltpu

# Physical constants (module defaults).
K = 0.25   # drag coefficient
M = 0.2    # mass
G = 9.81   # gravity

_LANES = 128
_SUBLANES = 8
_MAX_BLOCK_ROWS = 256          # 4*256*128*4B = 512 KiB input block; safe on v5e/v6e/v7x

_N_BISECT = 9                  # bracket shrink: t_hi / 512
_N_NEWTON = 4                  # quadratic polish (one exp + one approx vrcp per iter)


def _ballistics_kernel(x_ref, o_ref):
    """x_ref: (4, block_rows, 128) = [pos_x, pos_y, alpha, velocity]; o_ref: (block_rows, 128)."""
    pos_x0 = x_ref[0]
    pos_y0 = x_ref[1]
    alpha = x_ref[2]
    vel = x_ref[3] * 20.0                      # get_initial_state scales velocity by 20

    sin_a = jnp.sin(alpha)
    cos_a = jnp.cos(alpha)
    vs = vel * sin_a
    a_coef = G * M + K * vs                    # g*m + k*v*sin(alpha)
    m_over_k2 = M / (K * K)
    # f_y(t) = pos_y0 - m/k^2 * (a_coef*(exp(-kt/m)-1) + g*k*t)
    #        = m/k^2 * (c0 - a_coef*exp(-kt/m) - g*k*t)      with c0 below
    c0 = pos_y0 * (K * K / M) + a_coef

    # Bracket [0, t_hi]: f_y(0) = pos_y0 >= 0 and
    # f_y(t) <= pos_y0 + (m/k^2)|a_coef| - (g*m/k)*t  =>  f_y(t_hi) < 0.
    t_hi = (K / (G * M)) * (jnp.maximum(pos_y0, 0.0) + m_over_k2 * jnp.abs(a_coef)) + 1e-3

    # --- Bisection toward the descending-branch root, (mid, half_width) carry, unrolled.
    # Invariant: root in [mid - 2*hw, mid + 2*hw].
    mid = 0.5 * t_hi
    hw = 0.25 * t_hi
    for _ in range(_N_BISECT):
        e = jnp.exp((-K / M) * mid)
        above = (a_coef * e + (G * K) * mid) < c0      # f_y(mid) > 0  -> root to the right
        mid = mid + jnp.where(above, hw, -hw)
        hw = hw * 0.5
    lo_b = mid - 2.0 * hw
    hi_b = mid + 2.0 * hw

    # --- Newton polish from the right end of the bracket (f_y concave & decreasing past
    # the apex -> monotone convergence from the right), clamped to the bracket.
    t = hi_b
    for _ in range(_N_NEWTON):
        e = jnp.exp((-K / M) * t)
        ae = a_coef * e
        f = m_over_k2 * (c0 - ae - (G * K) * t)        # f_y(t)
        fp = jnp.minimum((ae - G * M) * (1.0 / K), -1e-12)   # dposydt(t), guarded < 0
        t = jnp.clip(t - f * pl.reciprocal(fp, approx=True), lo_b, hi_b)

    # _trajectory_x at the impact time (already includes the /10 of _run_forward).
    o_ref[...] = (pos_x0 - vel * cos_a * (M / K)
                  * (jnp.exp((-K / M) * t) - 1.0)) * 0.1


def _round_up(a, b):
    return -(-a // b) * b


@jax.jit
def ballistics_forward(x):
    """x: (N, 4) float32 -> (N, 1) float32 (matches Ballistics.forward, implicit y)."""
    n = x.shape[0]
    rows = _round_up(pl.cdiv(n, _LANES), _SUBLANES)

    # Block as large as possible (EUP pipelining + step-overhead amortization), capped
    # for v5e scoped VMEM, and split >= 2 ways when feasible so the "parallel" grid axis
    # keeps both v7x TensorCores busy.
    if rows <= _SUBLANES:
        block_rows = rows
    else:
        block_rows = min(_MAX_BLOCK_ROWS, _round_up(pl.cdiv(rows, 2), _SUBLANES))
    grid = pl.cdiv(rows, block_rows)
    rows_pad = grid * block_rows
    n_pad = rows_pad * _LANES

    xf = x.astype(jnp.float32)
    # One pad + transpose + reshape -> (4, rows_pad, 128).  Padded samples are all-zero
    # (pos_y=0, vel=0, alpha=0), which keeps the in-kernel event search finite.
    packed = jnp.pad(xf, ((0, n_pad - n), (0, 0))).T.reshape(4, rows_pad, _LANES)

    n_total = rows_pad * _LANES
    out = pl.pallas_call(
        _ballistics_kernel,
        out_shape=jax.ShapeDtypeStruct((rows_pad, _LANES), jnp.float32),
        grid=(grid,),
        in_specs=[pl.BlockSpec((4, block_rows, _LANES), lambda i: (0, i, 0))],
        out_specs=pl.BlockSpec((block_rows, _LANES), lambda i: (i, 0)),
        compiler_params=pltpu.CompilerParams(
            dimension_semantics=("parallel",)),
        cost_estimate=pl.CostEstimate(
            flops=60 * n_total,
            transcendentals=20 * n_total,
            bytes_accessed=20 * n_total),
    )(packed)

    return out.reshape(n_pad)[:n].reshape(n, 1)


def _reference_forward(x):
    """Pure-JAX closed-form reference (64-iteration bisection, no Pallas)."""
    pos_x0, pos_y0, alpha, vel = [x[:, i] for i in range(4)]
    vel = vel * 20.0
    a_coef = G * M + K * vel * jnp.sin(alpha)

    def f_y(t):
        return pos_y0 - (M / K**2) * (a_coef * (jnp.exp(-K * t / M) - 1.0) + G * K * t)

    ratio = jnp.maximum(1.0 + (K / (G * M)) * vel * jnp.sin(alpha), 1.0)
    t_apex = (M / K) * jnp.log(ratio)
    t_hi = (K / (G * M)) * (jnp.maximum(pos_y0, 0.0) + (M / K**2) * jnp.abs(a_coef)) + 1e-3
    t_hi = jnp.maximum(t_hi, t_apex + 1e-3)
    lo, hi = t_apex, t_hi
    for _ in range(64):
        mid = 0.5 * (lo + hi)
        up = f_y(mid) > 0.0
        lo = jnp.where(up, mid, lo)
        hi = jnp.where(up, hi, mid)
    t_ev = 0.5 * (lo + hi)
    out = (pos_x0 - vel * jnp.cos(alpha) * (M / K) * (jnp.exp(-K * t_ev / M) - 1.0)) / 10.0
    return out.reshape(-1, 1)


if __name__ == "__main__":
    key = jax.random.PRNGKey(0)
    k1, k2, k3, k4 = jax.random.split(key, 4)
    n = 8
    # [pos_x, pos_y, alpha, velocity] -- physically sensible launch conditions.
    pos_x = jax.random.uniform(k1, (n,), minval=0.0, maxval=2.0)
    pos_y = jax.random.uniform(k2, (n,), minval=1.0, maxval=5.0)
    alpha = jax.random.uniform(k3, (n,), minval=0.3, maxval=1.2)
    velocity = jax.random.uniform(k4, (n,), minval=0.5, maxval=2.0)
    x = jnp.stack([pos_x, pos_y, alpha, velocity], axis=1).astype(jnp.float32)

    y = jax.block_until_ready(ballistics_forward(x))
    y_ref = _reference_forward(x)

    assert y.shape == (n, 1), y.shape
    assert bool(jnp.all(jnp.isfinite(y)))
    assert bool(jnp.allclose(y, y_ref, atol=1e-4, rtol=1e-4)), (y, y_ref)
    print("KERNEL_OK")
</pallas_src>

<mosaic_0001>
module attributes {stable_mosaic.version = 11 : i64} {
  func.func @_ballistics_kernel(%arg0: i32, %arg1: memref<4x8x128xf32, #tpu.memory_space<vmem>>, %arg2: memref<8x128xf32, #tpu.memory_space<vmem>>) attributes {dimension_semantics = [#tpu.dimension_semantics<parallel>], iteration_bounds = array<i64: 1>, scalar_prefetch = 0 : i64, scratch_operands = 0 : i64, tpu.core_type = #tpu.core_type<tc>, window_params = [{transform_indices = @transform_0, window_bounds = array<i64: 4, 8, 128>}, {transform_indices = @transform_1, window_bounds = array<i64: 8, 128>}]} {
    %c0 = arith.constant 0 : index
    %c0_0 = arith.constant 0 : index
    %c0_1 = arith.constant 0 : index
    %0 = vector.load %arg1[%c0, %c0_0, %c0_1] : memref<4x8x128xf32, #tpu.memory_space<vmem>>, vector<1x8x128xf32>
    %1 = vector.shape_cast %0 : vector<1x8x128xf32> to vector<8x128xf32>
    %c1 = arith.constant 1 : index
    %c0_2 = arith.constant 0 : index
    %c0_3 = arith.constant 0 : index
    %2 = vector.load %arg1[%c1, %c0_2, %c0_3] : memref<4x8x128xf32, #tpu.memory_space<vmem>>, vector<1x8x128xf32>
    %3 = vector.shape_cast %2 : vector<1x8x128xf32> to vector<8x128xf32>
    %c2 = arith.constant 2 : index
    %c0_4 = arith.constant 0 : index
    %c0_5 = arith.constant 0 : index
    %4 = vector.load %arg1[%c2, %c0_4, %c0_5] : memref<4x8x128xf32, #tpu.memory_space<vmem>>, vector<1x8x128xf32>
    %5 = vector.shape_cast %4 : vector<1x8x128xf32> to vector<8x128xf32>
    %c3 = arith.constant 3 : index
    %c0_6 = arith.constant 0 : index
    %c0_7 = arith.constant 0 : index
    %6 = vector.load %arg1[%c3, %c0_6, %c0_7] : memref<4x8x128xf32, #tpu.memory_space<vmem>>, vector<1x8x128xf32>
    %7 = vector.shape_cast %6 : vector<1x8x128xf32> to vector<8x128xf32>
    %cst = arith.constant 2.000000e+01 : f32
    %8 = vector.broadcast %cst : f32 to vector<8x128xf32>
    %9 = arith.mulf %7, %8 : vector<8x128xf32>
    %10 = math.sin %5 : vector<8x128xf32>
    %11 = math.cos %5 : vector<8x128xf32>
    %12 = arith.mulf %9, %10 : vector<8x128xf32>
    %cst_8 = arith.constant 2.500000e-01 : f32
    %13 = vector.broadcast %cst_8 : f32 to vector<8x128xf32>
    %14 = arith.mulf %13, %12 : vector<8x128xf32>
    %cst_9 = arith.constant 1.962000e+00 : f32
    %15 = vector.broadcast %cst_9 : f32 to vector<8x128xf32>
    %16 = arith.addf %15, %14 : vector<8x128xf32>
    %cst_10 = arith.constant 3.125000e-01 : f32
    %17 = vector.broadcast %cst_10 : f32 to vector<8x128xf32>
    %18 = arith.mulf %3, %17 : vector<8x128xf32>
    %19 = arith.addf %18, %16 : vector<8x128xf32>
    %cst_11 = arith.constant 0.000000e+00 : f32
    %20 = vector.broadcast %cst_11 : f32 to vector<8x128xf32>
    %21 = arith.maximumf %3, %20 : vector<8x128xf32>
    %22 = math.absf %16 : vector<8x128xf32>
    %cst_12 = arith.constant 3.200000e+00 : f32
    %23 = vector.broadcast %cst_12 : f32 to vector<8x128xf32>
    %24 = arith.mulf %23, %22 : vector<8x128xf32>
    %25 = arith.addf %21, %24 : vector<8x128xf32>
    %cst_13 = arith.constant 0.127420992 : f32
    %26 = vector.broadcast %cst_13 : f32 to vector<8x128xf32>
    %27 = arith.mulf %26, %25 : vector<8x128xf32>
    %cst_14 = arith.constant 1.000000e-03 : f32
    %28 = vector.broadcast %cst_14 : f32 to vector<8x128xf32>
    %29 = arith.addf %27, %28 : vector<8x128xf32>
    %cst_15 = arith.constant 5.000000e-01 : f32
    %30 = vector.broadcast %cst_15 : f32 to vector<8x128xf32>
    %31 = arith.mulf %30, %29 : vector<8x128xf32>
    %cst_16 = arith.constant 2.500000e-01 : f32
    %32 = vector.broadcast %cst_16 : f32 to vector<8x128xf32>
    %33 = arith.mulf %32, %29 : vector<8x128xf32>
    %cst_17 = arith.constant -1.250000e+00 : f32
    %34 = vector.broadcast %cst_17 : f32 to vector<8x128xf32>
    %35 = arith.mulf %34, %31 : vector<8x128xf32>
    %36 = math.exp %35 : vector<8x128xf32>
    %37 = arith.mulf %16, %36 : vector<8x128xf32>
    %cst_18 = arith.constant 2.452500e+00 : f32
    %38 = vector.broadcast %cst_18 : f32 to vector<8x128xf32>
    %39 = arith.mulf %38, %31 : vector<8x128xf32>
    %40 = arith.addf %37, %39 : vector<8x128xf32>
    %41 = arith.cmpf olt, %40, %19 : vector<8x128xf32>
    %cst_19 = arith.constant 0.000000e+00 : f32
    %42 = vector.broadcast %cst_19 : f32 to vector<8x128xf32>
    %43 = arith.subf %42, %33 : vector<8x128xf32>
    %44 = arith.select %41, %33, %43 : vector<8x128xi1>, vector<8x128xf32>
    %45 = arith.addf %31, %44 : vector<8x128xf32>
    %cst_20 = arith.constant 5.000000e-01 : f32
    %46 = vector.broadcast %cst_20 : f32 to vector<8x128xf32>
    %47 = arith.mulf %33, %46 : vector<8x128xf32>
    %cst_21 = arith.constant -1.250000e+00 : f32
    %48 = vector.broadcast %cst_21 : f32 to vector<8x128xf32>
    %49 = arith.mulf %48, %45 : vector<8x128xf32>
    %50 = math.exp %49 : vector<8x128xf32>
    %51 = arith.mulf %16, %50 : vector<8x128xf32>
    %cst_22 = arith.constant 2.452500e+00 : f32
    %52 = vector.broadcast %cst_22 : f32 to vector<8x128xf32>
    %53 = arith.mulf %52, %45 : vector<8x128xf32>
    %54 = arith.addf %51, %53 : vector<8x128xf32>
    %55 = arith.cmpf olt, %54, %19 : vector<8x128xf32>
    %cst_23 = arith.constant 0.000000e+00 : f32
    %56 = vector.broadcast %cst_23 : f32 to vector<8x128xf32>
    %57 = arith.subf %56, %47 : vector<8x128xf32>
    %58 = arith.select %55, %47, %57 : vector<8x128xi1>, vector<8x128xf32>
    %59 = arith.addf %45, %58 : vector<8x128xf32>
    %cst_24 = arith.constant 5.000000e-01 : f32
    %60 = vector.broadcast %cst_24 : f32 to vector<8x128xf32>
    %61 = arith.mulf %47, %60 : vector<8x128xf32>
    %cst_25 = arith.constant -1.250000e+00 : f32
    %62 = vector.broadcast %cst_25 : f32 to vector<8x128xf32>
    %63 = arith.mulf %62, %59 : vector<8x128xf32>
    %64 = math.exp %63 : vector<8x128xf32>
    %65 = arith.mulf %16, %64 : vector<8x128xf32>
    %cst_26 = arith.constant 2.452500e+00 : f32
    %66 = vector.broadcast %cst_26 : f32 to vector<8x128xf32>
    %67 = arith.mulf %66, %59 : vector<8x128xf32>
    %68 = arith.addf %65, %67 : vector<8x128xf32>
    %69 = arith.cmpf olt, %68, %19 : vector<8x128xf32>
    %cst_27 = arith.constant 0.000000e+00 : f32
    %70 = vector.broadcast %cst_27 : f32 to vector<8x128xf32>
    %71 = arith.subf %70, %61 : vector<8x128xf32>
    %72 = arith.select %69, %61, %71 : vector<8x128xi1>, vector<8x128xf32>
    %73 = arith.addf %59, %72 : vector<8x128xf32>
    %cst_28 = arith.constant 5.000000e-01 : f32
    %74 = vector.broadcast %cst_28 : f32 to vector<8x128xf32>
    %75 = arith.mulf %61, %74 : vector<8x128xf32>
    %cst_29 = arith.constant -1.250000e+00 : f32
    %76 = vector.broadcast %cst_29 : f32 to vector<8x128xf32>
    %77 = arith.mulf %76, %73 : vector<8x128xf32>
    %78 = math.exp %77 : vector<8x128xf32>
    %79 = arith.mulf %16, %78 : vector<8x128xf32>
    %cst_30 = arith.constant 2.452500e+00 : f32
    %80 = vector.broadcast %cst_30 : f32 to vector<8x128xf32>
    %81 = arith.mulf %80, %73 : vector<8x128xf32>
    %82 = arith.addf %79, %81 : vector<8x128xf32>
    %83 = arith.cmpf olt, %82, %19 : vector<8x128xf32>
    %cst_31 = arith.constant 0.000000e+00 : f32
    %84 = vector.broadcast %cst_31 : f32 to vector<8x128xf32>
    %85 = arith.subf %84, %75 : vector<8x128xf32>
    %86 = arith.select %83, %75, %85 : vector<8x128xi1>, vector<8x128xf32>
    %87 = arith.addf %73, %86 : vector<8x128xf32>
    %cst_32 = arith.constant 5.000000e-01 : f32
    %88 = vector.broadcast %cst_32 : f32 to vector<8x128xf32>
    %89 = arith.mulf %75, %88 : vector<8x128xf32>
    %cst_33 = arith.constant -1.250000e+00 : f32
    %90 = vector.broadcast %cst_33 : f32 to vector<8x128xf32>
    %91 = arith.mulf %90, %87 : vector<8x128xf32>
    %92 = math.exp %91 : vector<8x128xf32>
    %93 = arith.mulf %16, %92 : vector<8x128xf32>
    %cst_34 = arith.constant 2.452500e+00 : f32
    %94 = vector.broadcast %cst_34 : f32 to vector<8x128xf32>
    %95 = arith.mulf %94, %87 : vector<8x128xf32>
    %96 = arith.addf %93, %95 : vector<8x128xf32>
    %97 = arith.cmpf olt, %96, %19 : vector<8x128xf32>
    %cst_35 = arith.constant 0.000000e+00 : f32
    %98 = vector.broadcast %cst_35 : f32 to vector<8x128xf32>
    %99 = arith.subf %98, %89 : vector<8x128xf32>
    %100 = arith.select %97, %89, %99 : vector<8x128xi1>, vector<8x128xf32>
    %101 = arith.addf %87, %100 : vector<8x128xf32>
    %cst_36 = arith.constant 5.000000e-01 : f32
    %102 = vector.broadcast %cst_36 : f32 to vector<8x128xf32>
    %103 = arith.mulf %89, %102 : vector<8x128xf32>
    %cst_37 = arith.constant -1.250000e+00 : f32
    %104 = vector.broadcast %cst_37 : f32 to vector<8x128xf32>
    %105 = arith.mulf %104, %101 : vector<8x128xf32>
    %106 = math.exp %105 : vector<8x128xf32>
    %107 = arith.mulf %16, %106 : vector<8x128xf32>
    %cst_38 = arith.constant 2.452500e+00 : f32
    %108 = vector.broadcast %cst_38 : f32 to vector<8x128xf32>
    %109 = arith.mulf %108, %101 : vector<8x128xf32>
    %110 = arith.addf %107, %109 : vector<8x128xf32>
    %111 = arith.cmpf olt, %110, %19 : vector<8x128xf32>
    %cst_39 = arith.constant 0.000000e+00 : f32
    %112 = vector.broadcast %cst_39 : f32 to vector<8x128xf32>
    %113 = arith.subf %112, %103 : vector<8x128xf32>
    %114 = arith.select %111, %103, %113 : vector<8x128xi1>, vector<8x128xf32>
    %115 = arith.addf %101, %114 : vector<8x128xf32>
    %cst_40 = arith.constant 5.000000e-01 : f32
    %116 = vector.broadcast %cst_40 : f32 to vector<8x128xf32>
    %117 = arith.mulf %103, %116 : vector<8x128xf32>
    %cst_41 = arith.constant -1.250000e+00 : f32
    %118 = vector.broadcast %cst_41 : f32 to vector<8x128xf32>
    %119 = arith.mulf %118, %115 : vector<8x128xf32>
    %120 = math.exp %119 : vector<8x128xf32>
    %121 = arith.mulf %16, %120 : vector<8x128xf32>
    %cst_42 = arith.constant 2.452500e+00 : f32
    %122 = vector.broadcast %cst_42 : f32 to vector<8x128xf32>
    %123 = arith.mulf %122, %115 : vector<8x128xf32>
    %124 = arith.addf %121, %123 : vector<8x128xf32>
    %125 = arith.cmpf olt, %124, %19 : vector<8x128xf32>
    %cst_43 = arith.constant 0.000000e+00 : f32
    %126 = vector.broadcast %cst_43 : f32 to vector<8x128xf32>
    %127 = arith.subf %126, %117 : vector<8x128xf32>
    %128 = arith.select %125, %117, %127 : vector<8x128xi1>, vector<8x128xf32>
    %129 = arith.addf %115, %128 : vector<8x128xf32>
    %cst_44 = arith.constant 5.000000e-01 : f32
    %130 = vector.broadcast %cst_44 : f32 to vector<8x128xf32>
    %131 = arith.mulf %117, %130 : vector<8x128xf32>
    %cst_45 = arith.constant -1.250000e+00 : f32
    %132 = vector.broadcast %cst_45 : f32 to vector<8x128xf32>
    %133 = arith.mulf %132, %129 : vector<8x128xf32>
    %134 = math.exp %133 : vector<8x128xf32>
    %135 = arith.mulf %16, %134 : vector<8x128xf32>
    %cst_46 = arith.constant 2.452500e+00 : f32
    %136 = vector.broadcast %cst_46 : f32 to vector<8x128xf32>
    %137 = arith.mulf %136, %129 : vector<8x128xf32>
    %138 = arith.addf %135, %137 : vector<8x128xf32>
    %139 = arith.cmpf olt, %138, %19 : vector<8x128xf32>
    %cst_47 = arith.constant 0.000000e+00 : f32
    %140 = vector.broadcast %cst_47 : f32 to vector<8x128xf32>
    %141 = arith.subf %140, %131 : vector<8x128xf32>
    %142 = arith.select %139, %131, %141 : vector<8x128xi1>, vector<8x128xf32>
    %143 = arith.addf %129, %142 : vector<8x128xf32>
    %cst_48 = arith.constant 5.000000e-01 : f32
    %144 = vector.broadcast %cst_48 : f32 to vector<8x128xf32>
    %145 = arith.mulf %131, %144 : vector<8x128xf32>
    %cst_49 = arith.constant -1.250000e+00 : f32
    %146 = vector.broadcast %cst_49 : f32 to vector<8x128xf32>
    %147 = arith.mulf %146, %143 : vector<8x128xf32>
    %148 = math.exp %147 : vector<8x128xf32>
    %149 = arith.mulf %16, %148 : vector<8x128xf32>
    %cst_50 = arith.constant 2.452500e+00 : f32
    %150 = vector.broadcast %cst_50 : f32 to vector<8x128xf32>
    %151 = arith.mulf %150, %143 : vector<8x128xf32>
    %152 = arith.addf %149, %151 : vector<8x128xf32>
    %153 = arith.cmpf olt, %152, %19 : vector<8x128xf32>
    %cst_51 = arith.constant 0.000000e+00 : f32
    %154 = vector.broadcast %cst_51 : f32 to vector<8x128xf32>
    %155 = arith.subf %154, %145 : vector<8x128xf32>
    %156 = arith.select %153, %145, %155 : vector<8x128xi1>, vector<8x128xf32>
    %157 = arith.addf %143, %156 : vector<8x128xf32>
    %cst_52 = arith.constant 5.000000e-01 : f32
    %158 = vector.broadcast %cst_52 : f32 to vector<8x128xf32>
    %159 = arith.mulf %145, %158 : vector<8x128xf32>
    %cst_53 = arith.constant 2.000000e+00 : f32
    %160 = vector.broadcast %cst_53 : f32 to vector<8x128xf32>
    %161 = arith.mulf %160, %159 : vector<8x128xf32>
    %162 = arith.subf %157, %161 : vector<8x128xf32>
    %cst_54 = arith.constant 2.000000e+00 : f32
    %163 = vector.broadcast %cst_54 : f32 to vector<8x128xf32>
    %164 = arith.mulf %163, %159 : vector<8x128xf32>
    %165 = arith.addf %157, %164 : vector<8x128xf32>
    %cst_55 = arith.constant -1.250000e+00 : f32
    %166 = vector.broadcast %cst_55 : f32 to vector<8x128xf32>
    %167 = arith.mulf %166, %165 : vector<8x128xf32>
    %168 = math.exp %167 : vector<8x128xf32>
    %169 = arith.mulf %16, %168 : vector<8x128xf32>
    %170 = arith.subf %19, %169 : vector<8x128xf32>
    %cst_56 = arith.constant 2.452500e+00 : f32
    %171 = vector.broadcast %cst_56 : f32 to vector<8x128xf32>
    %172 = arith.mulf %171, %165 : vector<8x128xf32>
    %173 = arith.subf %170, %172 : vector<8x128xf32>
    %cst_57 = arith.constant 3.200000e+00 : f32
    %174 = vector.broadcast %cst_57 : f32 to vector<8x128xf32>
    %175 = arith.mulf %174, %173 : vector<8x128xf32>
    %cst_58 = arith.constant 1.962000e+00 : f32
    %176 = vector.broadcast %cst_58 : f32 to vector<8x128xf32>
    %177 = arith.subf %169, %176 : vector<8x128xf32>
    %cst_59 = arith.constant 4.000000e+00 : f32
    %178 = vector.broadcast %cst_59 : f32 to vector<8x128xf32>
    %179 = arith.mulf %177, %178 : vector<8x128xf32>
    %cst_60 = arith.constant -9.99999996E-13 : f32
    %180 = vector.broadcast %cst_60 : f32 to vector<8x128xf32>
    %181 = arith.minimumf %179, %180 : vector<8x128xf32>
    %182 = tpu.reciprocal %181 {approx = true} : vector<8x128xf32> -> vector<8x128xf32>
    %183 = arith.mulf %175, %182 : vector<8x128xf32>
    %184 = arith.subf %165, %183 : vector<8x128xf32>
    %185 = arith.maximumf %162, %184 : vector<8x128xf32>
    %186 = arith.minimumf %165, %185 : vector<8x128xf32>
    %cst_61 = arith.constant -1.250000e+00 : f32
    %187 = vector.broadcast %cst_61 : f32 to vector<8x128xf32>
    %188 = arith.mulf %187, %186 : vector<8x128xf32>
    %189 = math.exp %188 : vector<8x128xf32>
    %190 = arith.mulf %16, %189 : vector<8x128xf32>
    %191 = arith.subf %19, %190 : vector<8x128xf32>
    %cst_62 = arith.constant 2.452500e+00 : f32
    %192 = vector.broadcast %cst_62 : f32 to vector<8x128xf32>
    %193 = arith.mulf %192, %186 : vector<8x128xf32>
    %194 = arith.subf %191, %193 : vector<8x128xf32>
    %cst_63 = arith.constant 3.200000e+00 : f32
    %195 = vector.broadcast %cst_63 : f32 to vector<8x128xf32>
    %196 = arith.mulf %195, %194 : vector<8x128xf32>
    %cst_64 = arith.constant 1.962000e+00 : f32
    %197 = vector.broadcast %cst_64 : f32 to vector<8x128xf32>
    %198 = arith.subf %190, %197 : vector<8x128xf32>
    %cst_65 = arith.constant 4.000000e+00 : f32
    %199 = vector.broadcast %cst_65 : f32 to vector<8x128xf32>
    %200 = arith.mulf %198, %199 : vector<8x128xf32>
    %cst_66 = arith.constant -9.99999996E-13 : f32
    %201 = vector.broadcast %cst_66 : f32 to vector<8x128xf32>
    %202 = arith.minimumf %200, %201 : vector<8x128xf32>
    %203 = tpu.reciprocal %202 {approx = true} : vector<8x128xf32> -> vector<8x128xf32>
    %204 = arith.mulf %196, %203 : vector<8x128xf32>
    %205 = arith.subf %186, %204 : vector<8x128xf32>
    %206 = arith.maximumf %162, %205 : vector<8x128xf32>
    %207 = arith.minimumf %165, %206 : vector<8x128xf32>
    %cst_67 = arith.constant -1.250000e+00 : f32
    %208 = vector.broadcast %cst_67 : f32 to vector<8x128xf32>
    %209 = arith.mulf %208, %207 : vector<8x128xf32>
    %210 = math.exp %209 : vector<8x128xf32>
    %211 = arith.mulf %16, %210 : vector<8x128xf32>
    %212 = arith.subf %19, %211 : vector<8x128xf32>
    %cst_68 = arith.constant 2.452500e+00 : f32
    %213 = vector.broadcast %cst_68 : f32 to vector<8x128xf32>
    %214 = arith.mulf %213, %207 : vector<8x128xf32>
    %215 = arith.subf %212, %214 : vector<8x128xf32>
    %cst_69 = arith.constant 3.200000e+00 : f32
    %216 = vector.broadcast %cst_69 : f32 to vector<8x128xf32>
    %217 = arith.mulf %216, %215 : vector<8x128xf32>
    %cst_70 = arith.constant 1.962000e+00 : f32
    %218 = vector.broadcast %cst_70 : f32 to vector<8x128xf32>
    %219 = arith.subf %211, %218 : vector<8x128xf32>
    %cst_71 = arith.constant 4.000000e+00 : f32
    %220 = vector.broadcast %cst_71 : f32 to vector<8x128xf32>
    %221 = arith.mulf %219, %220 : vector<8x128xf32>
    %cst_72 = arith.constant -9.99999996E-13 : f32
    %222 = vector.broadcast %cst_72 : f32 to vector<8x128xf32>
    %223 = arith.minimumf %221, %222 : vector<8x128xf32>
    %224 = tpu.reciprocal %223 {approx = true} : vector<8x128xf32> -> vector<8x128xf32>
    %225 = arith.mulf %217, %224 : vector<8x128xf32>
    %226 = arith.subf %207, %225 : vector<8x128xf32>
    %227 = arith.maximumf %162, %226 : vector<8x128xf32>
    %228 = arith.minimumf %165, %227 : vector<8x128xf32>
    %cst_73 = arith.constant -1.250000e+00 : f32
    %229 = vector.broadcast %cst_73 : f32 to vector<8x128xf32>
    %230 = arith.mulf %229, %228 : vector<8x128xf32>
    %231 = math.exp %230 : vector<8x128xf32>
    %232 = arith.mulf %16, %231 : vector<8x128xf32>
    %233 = arith.subf %19, %232 : vector<8x128xf32>
    %cst_74 = arith.constant 2.452500e+00 : f32
    %234 = vector.broadcast %cst_74 : f32 to vector<8x128xf32>
    %235 = arith.mulf %234, %228 : vector<8x128xf32>
    %236 = arith.subf %233, %235 : vector<8x128xf32>
    %cst_75 = arith.constant 3.200000e+00 : f32
    %237 = vector.broadcast %cst_75 : f32 to vector<8x128xf32>
    %238 = arith.mulf %237, %236 : vector<8x128xf32>
    %cst_76 = arith.constant 1.962000e+00 : f32
    %239 = vector.broadcast %cst_76 : f32 to vector<8x128xf32>
    %240 = arith.subf %232, %239 : vector<8x128xf32>
    %cst_77 = arith.constant 4.000000e+00 : f32
    %241 = vector.broadcast %cst_77 : f32 to vector<8x128xf32>
    %242 = arith.mulf %240, %241 : vector<8x128xf32>
    %cst_78 = arith.constant -9.99999996E-13 : f32
    %243 = vector.broadcast %cst_78 : f32 to vector<8x128xf32>
    %244 = arith.minimumf %242, %243 : vector<8x128xf32>
    %245 = tpu.reciprocal %244 {approx = true} : vector<8x128xf32> -> vector<8x128xf32>
    %246 = arith.mulf %238, %245 : vector<8x128xf32>
    %247 = arith.subf %228, %246 : vector<8x128xf32>
    %248 = arith.maximumf %162, %247 : vector<8x128xf32>
    %249 = arith.minimumf %165, %248 : vector<8x128xf32>
    %250 = arith.mulf %9, %11 : vector<8x128xf32>
    %cst_79 = arith.constant 8.000000e-01 : f32
    %251 = vector.broadcast %cst_79 : f32 to vector<8x128xf32>
    %252 = arith.mulf %250, %251 : vector<8x128xf32>
    %cst_80 = arith.constant -1.250000e+00 : f32
    %253 = vector.broadcast %cst_80 : f32 to vector<8x128xf32>
    %254 = arith.mulf %253, %249 : vector<8x128xf32>
    %255 = math.exp %254 : vector<8x128xf32>
    %cst_81 = arith.constant 1.000000e+00 : f32
    %256 = vector.broadcast %cst_81 : f32 to vector<8x128xf32>
    %257 = arith.subf %255, %256 : vector<8x128xf32>
    %258 = arith.mulf %252, %257 : vector<8x128xf32>
    %259 = arith.subf %1, %258 : vector<8x128xf32>
    %cst_82 = arith.constant 1.000000e-01 : f32
    %260 = vector.broadcast %cst_82 : f32 to vector<8x128xf32>
    %261 = arith.mulf %259, %260 : vector<8x128xf32>
    %c0_83 = arith.constant 0 : index
    %c0_84 = arith.constant 0 : index
    %262 = vector.load %arg2[%c0_83, %c0_84] : memref<8x128xf32, #tpu.memory_space<vmem>>, vector<8x128xf32>
    tpu.vector_store %arg2[%c0_83, %c0_84], %261 {strides = array<i32>} : memref<8x128xf32, #tpu.memory_space<vmem>>, vector<8x128xf32>,
    return
  }
  func.func @transform_0(%arg0: i32) -> (i32, i32, i32) {
    %c0_i32 = arith.constant 0 : i32
    %c0_i32_0 = arith.constant 0 : i32
    %c0_i32_1 = arith.constant 0 : i32
    return %c0_i32, %arg0, %c0_i32_0 : i32, i32, i32
  }
  func.func @transform_1(%arg0: i32) -> (i32, i32) {
    %c0_i32 = arith.constant 0 : i32
    %c0_i32_0 = arith.constant 0 : i32
    return %arg0, %c0_i32 : i32, i32
  }
}

</mosaic_0001>

<llo_original>
// kernel: ballistics_forward.1
$region0: #{ballistics_forward.1}
  #allocation0 [shape = 'u32[]', space=smem, size = 0x4, offset = 0x4, fixed_abs, tag = 'smem constant byte address 0x4 - core index']
  #allocation1 [shape = 'u32[144,128]{1,0:T(1,128)}', space=vmem, size = 0x12000, scoped, tag = 'internal scratch']
  %s0 = inlined_call_operand.vmem [shape: f32[4,8,128], index: 0, kind: input, shape index: {}]
  %s1 = inlined_call_operand.vmem [shape: f32[8,128], index: 1, kind: output, shape index: {}]
  %s2 = sld [smem:[#allocation0]]
  $region14: #{ballistics_forward.1} parent=0
    _
  %s4 = ssub.s32 1, %s2
  %s5 = scalar_select 0, %s4, %s2
  // Predicated region
  $region2: #{ballistics_forward.1} parent=0 // pred_check
    _
  $region3: #{ballistics_forward.1} parent=0 // pred_check_branch
    %7 = sbr.rel (0) target = $region5
  $region4: #{ballistics_forward.1} parent=0 // pred_region
    _
  $region5: #{ballistics_forward.1} parent=0 // pred_fallthru
    _
  %v8 = vld [vmem:[%s0] sm:$0xff]
  %s9 = scalar_lea.vmem %s0, 8
  %v10 = vld [vmem:[%s9] sm:$0xff]
  %s11 = scalar_lea.vmem %s0, 16
  %v12 = vld [vmem:[%s11] sm:$0xff]
  %s13 = scalar_lea.vmem %s0, 24
  %v14 = vld [vmem:[%s13] sm:$0xff]
  %v15 = vmul.f32 %v14, 20.0
  %v16 = vand.u32 2147483647, %v12
  %vm17 = vcmp.le.f32.partialorder %v16, 0.7853982
  %vm18 = vcmp.lt.s32.totalorder %v12, 0
  %v19 = vand.u32 %v12, 2139095040
  %v20 = vshrl.u32 %v19, 23
  %v21 = vsub.s32 %v20, 127
  %v22 = vand.u32 2147483647, %v12
  %v23 = vand.u32 %v22, 8388607
  %v24 = vor.u32 %v23, 8388608
  %v25 = vsub.s32 0, %v24
  %v26 = vadd.s32 %v21, 1
  %vm27 = vcmp.gt.s32.totalorder %v26, 0
  %v28 = vsel %vm27, %v26, 0
  %v29 = vshrl.u32 %v28, 5
  %v30 = vand.u32 %v28, 31
  %v31 = vsub.s32 32, %v30
  %v32 = vshrl.u32 683565275, %v31
  %v33 = vshll.u32 683565275, %v30
  %v34 = vshrl.u32 2475754826, %v31
  %v35 = vor.u32 %v33, %v34
  %v36 = vshll.u32 2475754826, %v30
  %v37 = vshrl.u32 2131351028, %v31
  %v38 = vor.u32 %v36, %v37
  %v39 = vshll.u32 2131351028, %v30
  %v40 = vshrl.u32 2102212464, %v31
  %v41 = vor.u32 %v39, %v40
  %v42 = vshll.u32 2102212464, %v30
  %v43 = vshrl.u32 920167782, %v31
  %v44 = vor.u32 %v42, %v43
  %v45 = vshll.u32 920167782, %v30
  %v46 = vshrl.u32 1326507024, %v31
  %v47 = vor.u32 %v45, %v46
  %vm48 = vcmp.lt.s32.totalorder %v29, 1
  %vm49 = vcmp.lt.s32.totalorder %v29, 2
  %vm50 = vcmp.lt.s32.totalorder %v29, 3
  %vm51 = vcmp.lt.s32.totalorder %v29, 4
  %v52 = vsel %vm48, %v32, %v35
  %v53 = vsel %vm51, %v41, 2102212464
  %v54 = vsel %vm50, %v38, %v53
  %v55 = vsel %vm49, %v52, %v54
  %v56 = vsel %vm48, %v35, %v38
  %v57 = vsel %vm51, %v44, 920167782
  %v58 = vsel %vm50, %v41, %v57
  %v59 = vsel %vm49, %v56, %v58
  %v60 = vsel %vm48, %v38, %v41
  %v61 = vsel %vm51, %v47, 1326507024
  %v62 = vsel %vm50, %v44, %v61
  %v63 = vsel %vm49, %v60, %v62
  %v64 = vshll.u32 %v24, 8
  %v65 = vmul.u32.u64.compose %v64, %v63
  %v66 = vextract.low.u32 %v65
  %v67 = vextract.high.u32 %v65
  %v68 = vmul.u32.u64.compose %v64, %v59
  %v69 = vextract.low.u32 %v68
  %v70 = vextract.high.u32 %v68
  %v71 = vmul.u32 %v64, %v55
  %v72 = vadd.s32 %v67, %v69
  %vm73 = vc.u32 %v67, %v69
  %v74 = vadd.s32 %v70, 1
  %v75 = vsel %vm73, %v74, %v70
  %v76 = vadd.s32 %v71, %v75
  %v77 = vadd.s32 %v76, 536870912
  %v78 = vshrl.u32 %v77, 30
  %v79 = vshll.u32 %v78, 30
  %v80 = vsub.s32 %v76, %v79
  %vm81 = vcmp.lt.s32.totalorder %v80, 0
  %v82 = vsub.s32 0, %v80
  %v83 = vsel %vm81, %v82, %v80
  %v84 = vclz %v83
  %v85 = vsub.s32 %v84, 2
  %vm86 = vcmp.gt.s32.totalorder 0, %v85
  %v87 = vsel %vm86, 0, %v85
  %v88 = vsub.s32 32, %v87
  %v89 = vshll.u32 %v80, %v87
  %v90 = vshrl.u32 %v72, %v88
  %v91 = vor.u32 %v89, %v90
  %v92 = vsub.s32 4294967266, %v87
  %v93 = vadd.s32 %v92, 127
  %v94 = vshll.u32 %v93, 23
  %v95 = vor.u32 4788187, %v94
  %v96 = vand.u32 2147483647, %v95
  %v98 = vcvt.s32.f32 %v91
  %v99 = vmul.f32 %v98, %v96
  %v100 = vxor.u32 %v99, 2147483648
  %v101 = vsel %vm18, %v100, %v99
  %v102 = vsub.s32 4, %v78
  %v103 = vsel %vm18, %v102, %v78
  %v104 = vsel %vm17, %v12, %v101
  %v105 = vsel %vm17, 0, %v103
  %v106 = vcosq.f32.pop %v104
  %v107 = vsinq.f32.pop %v104
  %vm108 = vweird.f32 %v12
  %v109 = vadd.s32 %v105, 3
  %v110 = vand.u32 %v109, 3
  %vm111 = vcmp.lt.s32.totalorder %v110, 2
  %vm112 = vcmp.eq.s32.totalorder %v110, 0
  %v113 = vxor.u32 %v107, 2147483648
  %v114 = vsel %vm112, %v106, %v113
  %vm115 = vcmp.eq.s32.totalorder %v110, 2
  %v116 = vxor.u32 %v106, 2147483648
  %v117 = vsel %vm115, %v116, %v107
  %v118 = vsel %vm111, %v114, %v117
  %v119 = vsel %vm108, nan, %v118
  %v120 = vand.u32 2147483647, %v12
  %vm121 = vcmp.le.f32.partialorder %v120, 0.7853982
  %vm122 = vcmp.lt.s32.totalorder %v12, 0
  %v123 = vand.u32 %v12, 2139095040
  %v124 = vshrl.u32 %v123, 23
  %v125 = vsub.s32 %v124, 127
  %v126 = vand.u32 2147483647, %v12
  %v127 = vand.u32 %v126, 8388607
  %v128 = vor.u32 %v127, 8388608
  %v129 = vsub.s32 0, %v128
  %v130 = vadd.s32 %v125, 1
  %vm131 = vcmp.gt.s32.totalorder %v130, 0
  %v132 = vsel %vm131, %v130, 0
  %v133 = vshrl.u32 %v132, 5
  %v134 = vand.u32 %v132, 31
  %v135 = vsub.s32 32, %v134
  %v136 = vshrl.u32 683565275, %v135
  %v137 = vshll.u32 683565275, %v134
  %v138 = vshrl.u32 2475754826, %v135
  %v139 = vor.u32 %v137, %v138
  %v140 = vshll.u32 2475754826, %v134
  %v141 = vshrl.u32 2131351028, %v135
  %v142 = vor.u32 %v140, %v141
  %v143 = vshll.u32 2131351028, %v134
  %v144 = vshrl.u32 2102212464, %v135
  %v145 = vor.u32 %v143, %v144
  %v146 = vshll.u32 2102212464, %v134
  %v147 = vshrl.u32 920167782, %v135
  %v148 = vor.u32 %v146, %v147
  %v149 = vshll.u32 920167782, %v134
  %v150 = vshrl.u32 1326507024, %v135
  %v151 = vor.u32 %v149, %v150
  %vm152 = vcmp.lt.s32.totalorder %v133, 1
  %vm153 = vcmp.lt.s32.totalorder %v133, 2
  %vm154 = vcmp.lt.s32.totalorder %v133, 3
  %vm155 = vcmp.lt.s32.totalorder %v133, 4
  %v156 = vsel %vm152, %v136, %v139
  %v157 = vsel %vm155, %v145, 2102212464
  %v158 = vsel %vm154, %v142, %v157
  %v159 = vsel %vm153, %v156, %v158
  %v160 = vsel %vm152, %v139, %v142
  %v161 = vsel %vm155, %v148, 920167782
  %v162 = vsel %vm154, %v145, %v161
  %v163 = vsel %vm153, %v160, %v162
  %v164 = vsel %vm152, %v142, %v145
  %v165 = vsel %vm155, %v151, 1326507024
  %v166 = vsel %vm154, %v148, %v165
  %v167 = vsel %vm153, %v164, %v166
  %v168 = vshll.u32 %v128, 8
  %v169 = vmul.u32.u64.compose %v168, %v167
  %v170 = vextract.low.u32 %v169
  %v171 = vextract.high.u32 %v169
  %v172 = vmul.u32.u64.compose %v168, %v163
  %v173 = vextract.low.u32 %v172
  %v174 = vextract.high.u32 %v172
  %v175 = vmul.u32 %v168, %v159
  %v176 = vadd.s32 %v171, %v173
  %vm177 = vc.u32 %v171, %v173
  %v178 = vadd.s32 %v174, 1
  %v179 = vsel %vm177, %v178, %v174
  %v180 = vadd.s32 %v175, %v179
  %v181 = vadd.s32 %v180, 536870912
  %v182 = vshrl.u32 %v181, 30
  %v183 = vshll.u32 %v182, 30
  %v184 = vsub.s32 %v180, %v183
  %vm185 = vcmp.lt.s32.totalorder %v184, 0
  %v186 = vsub.s32 0, %v184
  %v187 = vsel %vm185, %v186, %v184
  %v188 = vclz %v187
  %v189 = vsub.s32 %v188, 2
  %vm190 = vcmp.gt.s32.totalorder 0, %v189
  %v191 = vsel %vm190, 0, %v189
  %v192 = vsub.s32 32, %v191
  %v193 = vshll.u32 %v184, %v191
  %v194 = vshrl.u32 %v176, %v192
  %v195 = vor.u32 %v193, %v194
  %v196 = vsub.s32 4294967266, %v191
  %v197 = vadd.s32 %v196, 127
  %v198 = vshll.u32 %v197, 23
  %v199 = vor.u32 4788187, %v198
  %v200 = vand.u32 2147483647, %v199
  %v202 = vcvt.s32.f32 %v195
  %v203 = vmul.f32 %v202, %v200
  %v204 = vxor.u32 %v203, 2147483648
  %v205 = vsel %vm122, %v204, %v203
  %v206 = vsub.s32 4, %v182
  %v207 = vsel %vm122, %v206, %v182
  %v208 = vsel %vm121, %v12, %v205
  %v209 = vsel %vm121, 0, %v207
  %v210 = vcosq.f32.pop %v208
  %v211 = vsinq.f32.pop %v208
  %vm212 = vweird.f32 %v12
  %v213 = vand.u32 %v209, 3
  %vm214 = vcmp.lt.s32.totalorder %v213, 2
  %vm215 = vcmp.eq.s32.totalorder %v213, 0
  %v216 = vxor.u32 %v211, 2147483648
  %v217 = vsel %vm215, %v210, %v216
  %vm218 = vcmp.eq.s32.totalorder %v213, 2
  %v219 = vxor.u32 %v210, 2147483648
  %v220 = vsel %vm218, %v219, %v211
  %v221 = vsel %vm214, %v217, %v220
  %v222 = vsel %vm212, nan, %v221
  %v223 = vmul.f32 %v15, %v119
  %v224 = vmul.f32 %v223, 0.25
  %v225 = vadd.f32 %v224, 1.962
  %v226 = vmul.f32 %v10, 0.3125
  %v227 = vadd.f32 %v226, %v225
  %v228 = vmax.f32 %v10, 0.0
  %v229 = vand.u32 2147483647, %v225
  %v230 = vmul.f32 %v229, 3.2
  %v231 = vadd.f32 %v228, %v230
  %v232 = vmul.f32 %v231, 0.12742099
  %v233 = vadd.f32 %v232, 0.001
  %v234 = vmul.f32 %v233, 0.5
  %v235 = vmul.f32 %v233, 0.25
  %v236 = vmul.f32 %v234, -1.25
  %v237 = vmul.f32 %v236, 1.442695
  %v238 = vpow.pop %v237
  %v239 = vmul.f32 %v225, %v238
  %v240 = vmul.f32 %v234, 2.4525
  %v241 = vadd.f32 %v239, %v240
  %vm242 = vcmp.lt.f32.partialorder %v241, %v227
  %v243 = vsub.f32 0.0, %v235
  %v244 = vsel %vm242, %v235, %v243
  %v245 = vadd.f32 %v234, %v244
  %v246 = vmul.f32 %v235, 0.5
  %v247 = vmul.f32 %v245, -1.25
  %v248 = vmul.f32 %v247, 1.442695
  %v249 = vpow.pop %v248
  %v250 = vmul.f32 %v225, %v249
  %v251 = vmul.f32 %v245, 2.4525
  %v252 = vadd.f32 %v250, %v251
  %vm253 = vcmp.lt.f32.partialorder %v252, %v227
  %v254 = vsub.f32 0.0, %v246
  %v255 = vsel %vm253, %v246, %v254
  %v256 = vadd.f32 %v245, %v255
  %v257 = vmul.f32 %v246, 0.5
  %v258 = vmul.f32 %v256, -1.25
  %v259 = vmul.f32 %v258, 1.442695
  %v260 = vpow.pop %v259
  %v261 = vmul.f32 %v225, %v260
  %v262 = vmul.f32 %v256, 2.4525
  %v263 = vadd.f32 %v261, %v262
  %vm264 = vcmp.lt.f32.partialorder %v263, %v227
  %v265 = vsub.f32 0.0, %v257
  %v266 = vsel %vm264, %v257, %v265
  %v267 = vadd.f32 %v256, %v266
  %v268 = vmul.f32 %v257, 0.5
  %v269 = vmul.f32 %v267, -1.25
  %v270 = vmul.f32 %v269, 1.442695
  %v271 = vpow.pop %v270
  %v272 = vmul.f32 %v225, %v271
  %v273 = vmul.f32 %v267, 2.4525
  %v274 = vadd.f32 %v272, %v273
  %vm275 = vcmp.lt.f32.partialorder %v274, %v227
  %v276 = vsub.f32 0.0, %v268
  %v277 = vsel %vm275, %v268, %v276
  %v278 = vadd.f32 %v267, %v277
  %v279 = vmul.f32 %v268, 0.5
  %v280 = vmul.f32 %v278, -1.25
  %v281 = vmul.f32 %v280, 1.442695
  %v282 = vpow.pop %v281
  %v283 = vmul.f32 %v225, %v282
  %v284 = vmul.f32 %v278, 2.4525
  %v285 = vadd.f32 %v283, %v284
  %vm286 = vcmp.lt.f32.partialorder %v285, %v227
  %v287 = vsub.f32 0.0, %v279
  %v288 = vsel %vm286, %v279, %v287
  %v289 = vadd.f32 %v278, %v288
  %v290 = vmul.f32 %v279, 0.5
  %v291 = vmul.f32 %v289, -1.25
  %v292 = vmul.f32 %v291, 1.442695
  %v293 = vpow.pop %v292
  %v294 = vmul.f32 %v225, %v293
  %v295 = vmul.f32 %v289, 2.4525
  %v296 = vadd.f32 %v294, %v295
  %vm297 = vcmp.lt.f32.partialorder %v296, %v227
  %v298 = vsub.f32 0.0, %v290
  %v299 = vsel %vm297, %v290, %v298
  %v300 = vadd.f32 %v289, %v299
  %v301 = vmul.f32 %v290, 0.5
  %v302 = vmul.f32 %v300, -1.25
  %v303 = vmul.f32 %v302, 1.442695
  %v304 = vpow.pop %v303
  %v305 = vmul.f32 %v225, %v304
  %v306 = vmul.f32 %v300, 2.4525
  %v307 = vadd.f32 %v305, %v306
  %vm308 = vcmp.lt.f32.partialorder %v307, %v227
  %v309 = vsub.f32 0.0, %v301
  %v310 = vsel %vm308, %v301, %v309
  %v311 = vadd.f32 %v300, %v310
  %v312 = vmul.f32 %v301, 0.5
  %v313 = vmul.f32 %v311, -1.25
  %v314 = vmul.f32 %v313, 1.442695
  %v315 = vpow.pop %v314
  %v316 = vmul.f32 %v225, %v315
  %v317 = vmul.f32 %v311, 2.4525
  %v318 = vadd.f32 %v316, %v317
  %vm319 = vcmp.lt.f32.partialorder %v318, %v227
  %v320 = vsub.f32 0.0, %v312
  %v321 = vsel %vm319, %v312, %v320
  %v322 = vadd.f32 %v311, %v321
  %v323 = vmul.f32 %v312, 0.5
  %v324 = vmul.f32 %v322, -1.25
  %v325 = vmul.f32 %v324, 1.442695
  %v326 = vpow.pop %v325
  %v327 = vmul.f32 %v225, %v326
  %v328 = vmul.f32 %v322, 2.4525
  %v329 = vadd.f32 %v327, %v328
  %vm330 = vcmp.lt.f32.partialorder %v329, %v227
  %v331 = vsub.f32 0.0, %v323
  %v332 = vsel %vm330, %v323, %v331
  %v333 = vadd.f32 %v322, %v332
  %v334 = vmul.f32 %v323, 0.5
  %v335 = vmul.f32 %v334, 2.0
  %v336 = vsub.f32 %v333, %v335
  %v337 = vadd.f32 %v333, %v335
  %v338 = vmul.f32 %v337, -1.25
  %v339 = vmul.f32 %v338, 1.442695
  %v340 = vpow.pop %v339
  %v341 = vmul.f32 %v225, %v340
  %v342 = vsub.f32 %v227, %v341
  %v343 = vmul.f32 %v337, 2.4525
  %v344 = vsub.f32 %v342, %v343
  %v345 = vmul.f32 %v344, 3.2
  %v346 = vsub.f32 %v341, 1.962
  %v347 = vmul.f32 %v346, 4.0
  %v348 = vmin.f32 %v347, -1e-12
  %v349 = vrcp.pop %v348
  %v350 = vmul.f32 %v345, %v349
  %v351 = vsub.f32 %v337, %v350
  %v352 = vmax.f32 %v336, %v351
  %v353 = vmin.f32 %v337, %v352
  %v354 = vmul.f32 %v353, -1.25
  %v355 = vmul.f32 %v354, 1.442695
  %v356 = vpow.pop %v355
  %v357 = vmul.f32 %v225, %v356
  %v358 = vsub.f32 %v227, %v357
  %v359 = vmul.f32 %v353, 2.4525
  %v360 = vsub.f32 %v358, %v359
  %v361 = vmul.f32 %v360, 3.2
  %v362 = vsub.f32 %v357, 1.962
  %v363 = vmul.f32 %v362, 4.0
  %v364 = vmin.f32 %v363, -1e-12
  %v365 = vrcp.pop %v364
  %v366 = vmul.f32 %v361, %v365
  %v367 = vsub.f32 %v353, %v366
  %v368 = vmax.f32 %v336, %v367
  %v369 = vmin.f32 %v337, %v368
  %v370 = vmul.f32 %v369, -1.25
  %v371 = vmul.f32 %v370, 1.442695
  %v372 = vpow.pop %v371
  %v373 = vmul.f32 %v225, %v372
  %v374 = vsub.f32 %v227, %v373
  %v375 = vmul.f32 %v369, 2.4525
  %v376 = vsub.f32 %v374, %v375
  %v377 = vmul.f32 %v376, 3.2
  %v378 = vsub.f32 %v373, 1.962
  %v379 = vmul.f32 %v378, 4.0
  %v380 = vmin.f32 %v379, -1e-12
  %v381 = vrcp.pop %v380
  %v382 = vmul.f32 %v377, %v381
  %v383 = vsub.f32 %v369, %v382
  %v384 = vmax.f32 %v336, %v383
  %v385 = vmin.f32 %v337, %v384
  %v386 = vmul.f32 %v385, -1.25
  %v387 = vmul.f32 %v386, 1.442695
  %v388 = vpow.pop %v387
  %v389 = vmul.f32 %v225, %v388
  %v390 = vsub.f32 %v227, %v389
  %v391 = vmul.f32 %v385, 2.4525
  %v392 = vsub.f32 %v390, %v391
  %v393 = vmul.f32 %v392, 3.2
  %v394 = vsub.f32 %v389, 1.962
  %v395 = vmul.f32 %v394, 4.0
  %v396 = vmin.f32 %v395, -1e-12
  %v397 = vrcp.pop %v396
  %v398 = vmul.f32 %v393, %v397
  %v399 = vsub.f32 %v385, %v398
  %v400 = vmax.f32 %v336, %v399
  %v401 = vmin.f32 %v337, %v400
  %v402 = vmul.f32 %v15, %v222
  %v403 = vmul.f32 %v402, 0.8
  %v404 = vmul.f32 %v401, -1.25
  %v405 = vmul.f32 %v404, 1.442695
  %v406 = vpow.pop %v405
  %v407 = vsub.f32 %v406, 1.0
  %v408 = vmul.f32 %v403, %v407
  %v409 = vsub.f32 %v8, %v408
  %v410 = vmul.f32 %v409, 0.1
  %411 = vst [vmem:[%s1] sm:$0xff] %v410
  // Predicated region
  $region6: #{ballistics_forward.1} parent=0 // pred_check
    _
  $region7: #{ballistics_forward.1} parent=0 // pred_check_branch
    %413 = sbr.rel (0) target = $region9
  $region8: #{ballistics_forward.1} parent=0 // pred_region
    _
  $region9: #{ballistics_forward.1} parent=0 // pred_fallthru
    _
  // Predicated region
  $region10: #{ballistics_forward.1} parent=0 // pred_check
    _
  $region11: #{ballistics_forward.1} parent=0 // pred_check_branch
    %415 = sbr.rel (0) target = $region13
  $region12: #{ballistics_forward.1} parent=0 // pred_region
    _
  $region13: #{ballistics_forward.1} parent=0 // pred_fallthru
    _

</llo_original>
